<compile_context>
chip_gen: v7x
topology: tpu7x:2x2x1
jax: 0.10.0
libtpu: 0.0.40
codegen_flags: <defaults>
</compile_context>

<pallas_src>
import functools

import jax
import jax.numpy as jnp
from jax.experimental import pallas as pl
from jax.experimental.pallas import tpu as pltpu


# ----------------------------- Pallas kernel ------------------------------- #
def _actor_kernel(c_ref, state_ref, w1_ref, b1_ref, w2_ref, b2_ref,
                  aux_ref, hw_ref, hb_ref, re_ref, rc_ref, out_ref,
                  *, E, F, C, O):
    EF = E * F
    state = state_ref[...]                       # [TB, Din] bf16
    cid = c_ref[...]                             # [TB, 1]   int32
    TB = state.shape[0]

    # ---- mixture weights + head-select mask from one tiny MXU dot ---------- #
    # Out-of-range context ids give an all-zero onehot -> zero output row.
    onehot = (jax.lax.broadcasted_iota(jnp.int32, (TB, C), 1) == cid)
    aux = jnp.dot(onehot.astype(jnp.bfloat16), aux_ref[...],
                  preferred_element_type=jnp.float32)        # [TB, EF + C*O]
    wrep = aux[:, 0:EF]                                      # [TB, E*F] (128-aligned slice)
    sel = aux[:, EF:]                                        # [TB, C*O] (starts at lane 128)

    # ---- fused expert backbone: two lane-dense bf16 MXU matmuls ------------ #
    h1 = jnp.dot(state, w1_ref[...], preferred_element_type=jnp.float32) + b1_ref[...]
    h1 = jnp.maximum(h1, 0.0)                    # backbone ReLU (layer 0)
    h2 = jnp.dot(h1.astype(jnp.bfloat16), w2_ref[...],
                 preferred_element_type=jnp.float32) + b2_ref[...]
    h2 = jnp.maximum(h2, 0.0)                    # backbone ReLU == agg ReLU (idempotent)

    # ---- mixture: elementwise weight, sum over experts on the MXU ----------- #
    weighted = (wrep * h2).astype(jnp.bfloat16)
    mixed = jnp.dot(weighted, re_ref[...], preferred_element_type=jnp.float32)  # [TB, F]
    mixed = jnp.maximum(mixed, 0.0)              # agg_activation[1] = ReLU

    # ---- fused per-context heads: matmul, mask, sum over contexts on MXU ---- #
    heads = jnp.dot(mixed.astype(jnp.bfloat16), hw_ref[...],
                    preferred_element_type=jnp.float32) + hb_ref[...]           # [TB, C*O]
    masked = (heads * sel).astype(jnp.bfloat16)
    out_ref[...] = jnp.dot(masked, rc_ref[...], preferred_element_type=jnp.float32)


# ------------------------------ host wrappers ------------------------------ #
def pack_params(params):
    """One-time repack of torch-style per-expert/per-head weights into the
    fused, lane-dense (bf16) layouts consumed by the kernel."""
    E, Din, H1 = params["w1"].shape
    _, _, F = params["w2"].shape
    C, _, O = params["hw"].shape
    wdt = jnp.bfloat16

    w1p = params["w1"].transpose(1, 0, 2).reshape(Din, E * H1).astype(wdt)   # [Din, E*H1]
    b1p = params["b1"].reshape(1, E * H1).astype(jnp.float32)
    w2p = jnp.zeros((E * H1, E * F), jnp.float32)                            # block-diagonal
    for e in range(E):
        w2p = w2p.at[e * H1:(e + 1) * H1, e * F:(e + 1) * F].set(params["w2"][e])
    w2p = w2p.astype(wdt)
    b2p = params["b2"].reshape(1, E * F).astype(jnp.float32)

    # AUX: onehot(c) @ AUX -> [mixture weights repeated per feature | head mask]
    wtexp = jnp.repeat(params["wt"], F, axis=1)                              # [C, E*F]
    sel_expand = jnp.kron(jnp.eye(C, dtype=jnp.float32),
                          jnp.ones((1, O), jnp.float32))                     # [C, C*O]
    aux = jnp.concatenate([wtexp, sel_expand], axis=1).astype(wdt)           # [C, E*F + C*O]

    hwp = params["hw"].transpose(1, 0, 2).reshape(F, C * O).astype(wdt)      # [F, C*O]
    hbp = params["hb"].reshape(1, C * O).astype(jnp.float32)

    # Stacked-identity reducers: sum over experts / over contexts on the MXU.
    r_e = jnp.tile(jnp.eye(F, dtype=jnp.float32), (E, 1)).astype(wdt)        # [E*F, F]
    r_c = jnp.tile(jnp.eye(O, dtype=jnp.float32), (C, 1)).astype(wdt)        # [C*O, O]

    return dict(w1=w1p, b1=b1p, w2=w2p, b2=b2p, aux=aux, hw=hwp, hb=hbp,
                r_e=r_e, r_c=r_c, dims=(E, H1, F, C, O, Din))


def _round_up(x, m):
    return ((x + m - 1) // m) * m


def _pick_row_tile(B):
    # Big enough to amortize the ~0.35us per-grid-step overhead (no TB=8
    # fallthrough for awkward B), capped at 256 so B >= 512 gives >= 2 grid
    # steps for v7x megacore sharding of the "parallel" batch axis.
    n_steps = max(1, -(-B // 256))          # cdiv(B, 256)
    return _round_up(-(-B // n_steps), 8)   # cdiv(B, n_steps) rounded up to 8


def actor_forward(state, c, packed):
    """Pallas forward. state: [B, Din] float, c: [B] int32 context ids."""
    E, H1, F, C, O, Din = packed["dims"]
    B = state.shape[0]
    TB = _pick_row_tile(B)
    Bp = _round_up(B, TB)
    grid = (Bp // TB,)

    state = state.astype(jnp.bfloat16)
    c = c.astype(jnp.int32)
    if Bp != B:
        state = jnp.pad(state, ((0, Bp - B), (0, 0)))
        c = jnp.pad(c, (0, Bp - B))           # padded rows use context 0; sliced off below
    c2d = c.reshape(Bp, 1)

    kernel = functools.partial(_actor_kernel, E=E, F=F, C=C, O=O)

    def _row(i):
        return (i, 0)

    def _const(i):
        return (0, 0)

    args = (c2d, state, packed["w1"], packed["b1"], packed["w2"], packed["b2"],
            packed["aux"], packed["hw"], packed["hb"], packed["r_e"], packed["r_c"])
    in_specs = [
        pl.BlockSpec((TB, 1), _row),            # context ids (row-tiled)
        pl.BlockSpec((TB, Din), _row),          # state (row-tiled)
        pl.BlockSpec(packed["w1"].shape, _const),
        pl.BlockSpec(packed["b1"].shape, _const),
        pl.BlockSpec(packed["w2"].shape, _const),
        pl.BlockSpec(packed["b2"].shape, _const),
        pl.BlockSpec(packed["aux"].shape, _const),
        pl.BlockSpec(packed["hw"].shape, _const),
        pl.BlockSpec(packed["hb"].shape, _const),
        pl.BlockSpec(packed["r_e"].shape, _const),
        pl.BlockSpec(packed["r_c"].shape, _const),
    ]

    flops = 2 * Bp * (C * (E * F + C * O)       # onehot @ AUX
                      + Din * (E * H1)          # backbone layer 1
                      + (E * H1) * (E * F)      # backbone layer 2 (block-diag, counted dense)
                      + (E * F) * F             # expert-sum reducer
                      + F * (C * O)             # fused heads
                      + (C * O) * O)            # context-sum reducer
    # Weights are DMA'd once (constant index maps), so count each operand once.
    bytes_accessed = sum(int(a.size) * a.dtype.itemsize for a in args) + Bp * O * 4

    out = pl.pallas_call(
        kernel,
        out_shape=jax.ShapeDtypeStruct((Bp, O), jnp.float32),
        grid=grid,
        in_specs=in_specs,
        out_specs=pl.BlockSpec((TB, O), _row),
        compiler_params=pltpu.CompilerParams(dimension_semantics=("parallel",)),
        cost_estimate=pl.CostEstimate(flops=flops, transcendentals=0,
                                      bytes_accessed=bytes_accessed),
    )(*args)
    return out[:B]


# ------------------------- deterministic parameters ------------------------ #
def _xavier(key, shape, fan_in, fan_out, gain):
    bound = gain * (6.0 / (fan_in + fan_out)) ** 0.5
    return jax.random.uniform(key, shape, jnp.float32, -bound, bound)


def init_params(key, obs_dim, n_features, n_experts, n_contexts, n_output):
    relu_gain = 2.0 ** 0.5
    h1, h2 = n_features
    ks = jax.random.split(key, 8)
    return {
        # task encoder weight, stored transposed as [C, E]
        "wt": _xavier(ks[0], (n_contexts, n_experts), n_contexts, n_experts, 1.0),
        # per-expert backbone (2 layers, both ReLU), weights stored [E, in, out]
        "w1": _xavier(ks[1], (n_experts, obs_dim, h1), obs_dim, h1, relu_gain),
        "b1": jax.random.uniform(ks[2], (n_experts, 1, h1), jnp.float32,
                                 -1.0 / obs_dim ** 0.5, 1.0 / obs_dim ** 0.5),
        "w2": _xavier(ks[3], (n_experts, h1, h2), h1, h2, relu_gain),
        "b2": jax.random.uniform(ks[4], (n_experts, 1, h2), jnp.float32,
                                 -1.0 / h1 ** 0.5, 1.0 / h1 ** 0.5),
        # per-context output heads (no hidden head layers), stacked [C, F, O]
        "hw": _xavier(ks[5], (n_contexts, h2, n_output), h2, n_output, 1.0),
        "hb": jax.random.uniform(ks[6], (n_contexts, 1, n_output), jnp.float32,
                                 -1.0 / h2 ** 0.5, 1.0 / h2 ** 0.5),
    }


# ------------------------------ pure-JAX reference -------------------------- #
def reference_forward(state, c, params):
    n_contexts = params["hw"].shape[0]
    onehot = jax.nn.one_hot(c, n_contexts, dtype=jnp.float32)
    w = onehot @ params["wt"]                                    # [B, E]
    feats = []
    for e in range(params["w1"].shape[0]):
        h = jnp.maximum(state @ params["w1"][e] + params["b1"][e], 0.0)
        h = jnp.maximum(h @ params["w2"][e] + params["b2"][e], 0.0)
        feats.append(h)
    feats = jnp.maximum(jnp.stack(feats), 0.0)                   # [E, B, F]
    mixed = jnp.einsum("be,ebf->bf", w, feats)
    mixed = jnp.maximum(mixed, 0.0)
    heads = jnp.einsum("bf,cfo->cbo", mixed, params["hw"]) + params["hb"]
    return jnp.einsum("bc,cbo->bo", onehot, heads)


# ----------------------------------- main ----------------------------------- #
if __name__ == "__main__":
    root = jax.random.PRNGKey(0)
    k_params, k_state, k_ctx = jax.random.split(root, 3)

    B = 8
    obs_dim = 16          # input_shape = (16,)
    n_features = [32, 32]
    n_experts = 4
    n_contexts = 3
    n_output = 4          # output_shape = (4,), shared_mu_sigma=False

    params = init_params(k_params, obs_dim, n_features, n_experts,
                         n_contexts, n_output)
    packed = pack_params(params)
    state = jax.random.normal(k_state, (B, obs_dim), jnp.float32)
    c = jax.random.randint(k_ctx, (B,), 0, n_contexts, jnp.int32)

    out = actor_forward(state, c, packed)
    out = jax.block_until_ready(out)

    ref = reference_forward(state, c, params)
    assert out.shape == (B, n_output)
    # bf16 MXU operands -> loosened tolerance vs the f32 reference.
    assert bool(jnp.allclose(out, ref, atol=5e-2, rtol=5e-2)), "kernel != reference"

    print("KERNEL_OK")
</pallas_src>

<mosaic_0001>
module attributes {stable_mosaic.version = 11 : i64} {
  func.func @_actor_kernel(%arg0: i32, %arg1: memref<8x1xi32, #tpu.memory_space<vmem>>, %arg2: memref<8x16xbf16, #tpu.memory_space<vmem>>, %arg3: memref<16x128xbf16, #tpu.memory_space<vmem>>, %arg4: memref<1x128xf32, #tpu.memory_space<vmem>>, %arg5: memref<128x128xbf16, #tpu.memory_space<vmem>>, %arg6: memref<1x128xf32, #tpu.memory_space<vmem>>, %arg7: memref<3x140xbf16, #tpu.memory_space<vmem>>, %arg8: memref<32x12xbf16, #tpu.memory_space<vmem>>, %arg9: memref<1x12xf32, #tpu.memory_space<vmem>>, %arg10: memref<128x32xbf16, #tpu.memory_space<vmem>>, %arg11: memref<12x4xbf16, #tpu.memory_space<vmem>>, %arg12: memref<8x4xf32, #tpu.memory_space<vmem>>) attributes {dimension_semantics = [#tpu.dimension_semantics<parallel>], iteration_bounds = array<i64: 1>, scalar_prefetch = 0 : i64, scratch_operands = 0 : i64, tpu.core_type = #tpu.core_type<tc>, window_params = [{transform_indices = @transform_0, window_bounds = array<i64: 8, 1>}, {transform_indices = @transform_1, window_bounds = array<i64: 8, 16>}, {pipeline_mode = #tpu.pipeline_mode<synchronous>, transform_indices = @transform_2, window_bounds = array<i64: 16, 128>}, {pipeline_mode = #tpu.pipeline_mode<synchronous>, transform_indices = @transform_3, window_bounds = array<i64: 1, 128>}, {pipeline_mode = #tpu.pipeline_mode<synchronous>, transform_indices = @transform_4, window_bounds = array<i64: 128, 128>}, {pipeline_mode = #tpu.pipeline_mode<synchronous>, transform_indices = @transform_5, window_bounds = array<i64: 1, 128>}, {pipeline_mode = #tpu.pipeline_mode<synchronous>, transform_indices = @transform_6, window_bounds = array<i64: 3, 140>}, {pipeline_mode = #tpu.pipeline_mode<synchronous>, transform_indices = @transform_7, window_bounds = array<i64: 32, 12>}, {pipeline_mode = #tpu.pipeline_mode<synchronous>, transform_indices = @transform_8, window_bounds = array<i64: 1, 12>}, {pipeline_mode = #tpu.pipeline_mode<synchronous>, transform_indices = @transform_9, window_bounds = array<i64: 128, 32>}, {pipeline_mode = #tpu.pipeline_mode<synchronous>, transform_indices = @transform_10, window_bounds = array<i64: 12, 4>}, {transform_indices = @transform_11, window_bounds = array<i64: 8, 4>}]} {
    %c0 = arith.constant 0 : index
    %c0_0 = arith.constant 0 : index
    %0 = vector.load %arg2[%c0, %c0_0] : memref<8x16xbf16, #tpu.memory_space<vmem>>, vector<8x16xbf16>
    %c0_1 = arith.constant 0 : index
    %c0_2 = arith.constant 0 : index
    %1 = vector.load %arg1[%c0_1, %c0_2] : memref<8x1xi32, #tpu.memory_space<vmem>>, vector<8x1xi32>
    %2 = tpu.iota {dimensions = array<i32: 1>} : vector<8x3xi32>
    %3 = vector.broadcast %1 : vector<8x1xi32> to vector<8x3xi32>
    %4 = arith.cmpi eq, %2, %3 : vector<8x3xi32>
    %5 = arith.extui %4 : vector<8x3xi1> to vector<8x3xi32>
    %6 = arith.sitofp %5 : vector<8x3xi32> to vector<8x3xf32>
    %7 = arith.truncf %6 : vector<8x3xf32> to vector<8x3xbf16>
    %c0_3 = arith.constant 0 : index
    %c0_4 = arith.constant 0 : index
    %8 = vector.load %arg7[%c0_3, %c0_4] : memref<3x140xbf16, #tpu.memory_space<vmem>>, vector<3x140xbf16>
    %cst = arith.constant dense<0.000000e+00> : vector<8x140xf32>
    %9 = tpu.matmul %7, %8, %cst {dimension_numbers = #tpu.dot_dimension_numbers<[1], [0], [0], [1], [0, 0, 1, 1], [], []>} : vector<8x3xbf16>, vector<3x140xbf16>, vector<8x140xf32> -> vector<8x140xf32>
    %10 = vector.extract_strided_slice %9 {offsets = [0, 0], sizes = [8, 128], strides = [1, 1]} : vector<8x140xf32> to vector<8x128xf32>
    %11 = vector.extract_strided_slice %9 {offsets = [0, 128], sizes = [8, 12], strides = [1, 1]} : vector<8x140xf32> to vector<8x12xf32>
    %c0_5 = arith.constant 0 : index
    %c0_6 = arith.constant 0 : index
    %12 = vector.load %arg3[%c0_5, %c0_6] : memref<16x128xbf16, #tpu.memory_space<vmem>>, vector<16x128xbf16>
    %cst_7 = arith.constant dense<0.000000e+00> : vector<8x128xf32>
    %13 = tpu.matmul %0, %12, %cst_7 {dimension_numbers = #tpu.dot_dimension_numbers<[1], [0], [0], [1], [0, 0, 1, 1], [], []>} : vector<8x16xbf16>, vector<16x128xbf16>, vector<8x128xf32> -> vector<8x128xf32>
    %c0_8 = arith.constant 0 : index
    %c0_9 = arith.constant 0 : index
    %14 = vector.load %arg4[%c0_8, %c0_9] : memref<1x128xf32, #tpu.memory_space<vmem>>, vector<1x128xf32>
    %15 = vector.broadcast %14 : vector<1x128xf32> to vector<8x128xf32>
    %16 = arith.addf %13, %15 : vector<8x128xf32>
    %cst_10 = arith.constant 0.000000e+00 : f32
    %17 = vector.broadcast %cst_10 : f32 to vector<8x128xf32>
    %18 = arith.maximumf %16, %17 : vector<8x128xf32>
    %19 = arith.truncf %18 : vector<8x128xf32> to vector<8x128xbf16>
    %c0_11 = arith.constant 0 : index
    %c0_12 = arith.constant 0 : index
    %20 = vector.load %arg5[%c0_11, %c0_12] : memref<128x128xbf16, #tpu.memory_space<vmem>>, vector<128x128xbf16>
    %cst_13 = arith.constant dense<0.000000e+00> : vector<8x128xf32>
    %21 = tpu.matmul %19, %20, %cst_13 {dimension_numbers = #tpu.dot_dimension_numbers<[1], [0], [0], [1], [0, 0, 1, 1], [], []>} : vector<8x128xbf16>, vector<128x128xbf16>, vector<8x128xf32> -> vector<8x128xf32>
    %c0_14 = arith.constant 0 : index
    %c0_15 = arith.constant 0 : index
    %22 = vector.load %arg6[%c0_14, %c0_15] : memref<1x128xf32, #tpu.memory_space<vmem>>, vector<1x128xf32>
    %23 = vector.broadcast %22 : vector<1x128xf32> to vector<8x128xf32>
    %24 = arith.addf %21, %23 : vector<8x128xf32>
    %cst_16 = arith.constant 0.000000e+00 : f32
    %25 = vector.broadcast %cst_16 : f32 to vector<8x128xf32>
    %26 = arith.maximumf %24, %25 : vector<8x128xf32>
    %27 = arith.mulf %10, %26 : vector<8x128xf32>
    %28 = arith.truncf %27 : vector<8x128xf32> to vector<8x128xbf16>
    %c0_17 = arith.constant 0 : index
    %c0_18 = arith.constant 0 : index
    %29 = vector.load %arg10[%c0_17, %c0_18] : memref<128x32xbf16, #tpu.memory_space<vmem>>, vector<128x32xbf16>
    %cst_19 = arith.constant dense<0.000000e+00> : vector<8x32xf32>
    %30 = tpu.matmul %28, %29, %cst_19 {dimension_numbers = #tpu.dot_dimension_numbers<[1], [0], [0], [1], [0, 0, 1, 1], [], []>} : vector<8x128xbf16>, vector<128x32xbf16>, vector<8x32xf32> -> vector<8x32xf32>
    %cst_20 = arith.constant 0.000000e+00 : f32
    %31 = vector.broadcast %cst_20 : f32 to vector<8x32xf32>
    %32 = arith.maximumf %30, %31 : vector<8x32xf32>
    %33 = arith.truncf %32 : vector<8x32xf32> to vector<8x32xbf16>
    %c0_21 = arith.constant 0 : index
    %c0_22 = arith.constant 0 : index
    %34 = vector.load %arg8[%c0_21, %c0_22] : memref<32x12xbf16, #tpu.memory_space<vmem>>, vector<32x12xbf16>
    %cst_23 = arith.constant dense<0.000000e+00> : vector<8x12xf32>
    %35 = tpu.matmul %33, %34, %cst_23 {dimension_numbers = #tpu.dot_dimension_numbers<[1], [0], [0], [1], [0, 0, 1, 1], [], []>} : vector<8x32xbf16>, vector<32x12xbf16>, vector<8x12xf32> -> vector<8x12xf32>
    %c0_24 = arith.constant 0 : index
    %c0_25 = arith.constant 0 : index
    %36 = vector.load %arg9[%c0_24, %c0_25] : memref<1x12xf32, #tpu.memory_space<vmem>>, vector<1x12xf32>
    %37 = vector.broadcast %36 : vector<1x12xf32> to vector<8x12xf32>
    %38 = arith.addf %35, %37 : vector<8x12xf32>
    %39 = arith.mulf %38, %11 : vector<8x12xf32>
    %40 = arith.truncf %39 : vector<8x12xf32> to vector<8x12xbf16>
    %c0_26 = arith.constant 0 : index
    %c0_27 = arith.constant 0 : index
    %41 = vector.load %arg11[%c0_26, %c0_27] : memref<12x4xbf16, #tpu.memory_space<vmem>>, vector<12x4xbf16>
    %cst_28 = arith.constant dense<0.000000e+00> : vector<8x4xf32>
    %42 = tpu.matmul %40, %41, %cst_28 {dimension_numbers = #tpu.dot_dimension_numbers<[1], [0], [0], [1], [0, 0, 1, 1], [], []>} : vector<8x12xbf16>, vector<12x4xbf16>, vector<8x4xf32> -> vector<8x4xf32>
    %c0_29 = arith.constant 0 : index
    %c0_30 = arith.constant 0 : index
    %43 = vector.load %arg12[%c0_29, %c0_30] : memref<8x4xf32, #tpu.memory_space<vmem>>, vector<8x4xf32>
    tpu.vector_store %arg12[%c0_29, %c0_30], %42 {strides = array<i32>} : memref<8x4xf32, #tpu.memory_space<vmem>>, vector<8x4xf32>,
    return
  }
  func.func @transform_0(%arg0: i32) -> (i32, i32) {
    %c0_i32 = arith.constant 0 : i32
    %c0_i32_0 = arith.constant 0 : i32
    return %arg0, %c0_i32 : i32, i32
  }
  func.func @transform_1(%arg0: i32) -> (i32, i32) {
    %c0_i32 = arith.constant 0 : i32
    %c0_i32_0 = arith.constant 0 : i32
    return %arg0, %c0_i32 : i32, i32
  }
  func.func @transform_2(%arg0: i32) -> (i32, i32) {
    %c0_i32 = arith.constant 0 : i32
    %c0_i32_0 = arith.constant 0 : i32
    %c0_i32_1 = arith.constant 0 : i32
    return %c0_i32, %c0_i32_0 : i32, i32
  }
  func.func @transform_3(%arg0: i32) -> (i32, i32) {
    %c0_i32 = arith.constant 0 : i32
    %c0_i32_0 = arith.constant 0 : i32
    %c0_i32_1 = arith.constant 0 : i32
    return %c0_i32, %c0_i32_0 : i32, i32
  }
  func.func @transform_4(%arg0: i32) -> (i32, i32) {
    %c0_i32 = arith.constant 0 : i32
    %c0_i32_0 = arith.constant 0 : i32
    %c0_i32_1 = arith.constant 0 : i32
    return %c0_i32, %c0_i32_0 : i32, i32
  }
  func.func @transform_5(%arg0: i32) -> (i32, i32) {
    %c0_i32 = arith.constant 0 : i32
    %c0_i32_0 = arith.constant 0 : i32
    %c0_i32_1 = arith.constant 0 : i32
    return %c0_i32, %c0_i32_0 : i32, i32
  }
  func.func @transform_6(%arg0: i32) -> (i32, i32) {
    %c0_i32 = arith.constant 0 : i32
    %c0_i32_0 = arith.constant 0 : i32
    %c0_i32_1 = arith.constant 0 : i32
    return %c0_i32, %c0_i32_0 : i32, i32
  }
  func.func @transform_7(%arg0: i32) -> (i32, i32) {
    %c0_i32 = arith.constant 0 : i32
    %c0_i32_0 = arith.constant 0 : i32
    %c0_i32_1 = arith.constant 0 : i32
    return %c0_i32, %c0_i32_0 : i32, i32
  }
  func.func @transform_8(%arg0: i32) -> (i32, i32) {
    %c0_i32 = arith.constant 0 : i32
    %c0_i32_0 = arith.constant 0 : i32
    %c0_i32_1 = arith.constant 0 : i32
    return %c0_i32, %c0_i32_0 : i32, i32
  }
  func.func @transform_9(%arg0: i32) -> (i32, i32) {
    %c0_i32 = arith.constant 0 : i32
    %c0_i32_0 = arith.constant 0 : i32
    %c0_i32_1 = arith.constant 0 : i32
    return %c0_i32, %c0_i32_0 : i32, i32
  }
  func.func @transform_10(%arg0: i32) -> (i32, i32) {
    %c0_i32 = arith.constant 0 : i32
    %c0_i32_0 = arith.constant 0 : i32
    %c0_i32_1 = arith.constant 0 : i32
    return %c0_i32, %c0_i32_0 : i32, i32
  }
  func.func @transform_11(%arg0: i32) -> (i32, i32) {
    %c0_i32 = arith.constant 0 : i32
    %c0_i32_0 = arith.constant 0 : i32
    return %arg0, %c0_i32 : i32, i32
  }
}

</mosaic_0001>

<llo_original>
// kernel: tpu_custom_call.1
$region0: #{tpu_custom_call.1}
  #allocation0 [shape = 'u32[]', space=smem, size = 0x4, offset = 0x4, fixed_abs, tag = 'smem constant byte address 0x4 - core index']
  #allocation1 [shape = 'u32[144,128]{1,0:T(1,128)}', space=vmem, size = 0x12000, scoped, tag = 'internal scratch']
  %s0 = inlined_call_operand.vmem [shape: s32[8,1], index: 0, kind: input, shape index: {}]
  %s1 = inlined_call_operand.vmem [shape: bf16[8,16], index: 1, kind: input, shape index: {}]
  %s2 = inlined_call_operand.vmem [shape: bf16[16,128], index: 2, kind: input, shape index: {}]
  %s3 = inlined_call_operand.vmem [shape: f32[1,128], index: 3, kind: input, shape index: {}]
  %s4 = inlined_call_operand.vmem [shape: bf16[128,128], index: 4, kind: input, shape index: {}]
  %s5 = inlined_call_operand.vmem [shape: f32[1,128], index: 5, kind: input, shape index: {}]
  %s6 = inlined_call_operand.vmem [shape: bf16[3,140], index: 6, kind: input, shape index: {}]
  %s7 = inlined_call_operand.vmem [shape: bf16[32,12], index: 7, kind: input, shape index: {}]
  %s8 = inlined_call_operand.vmem [shape: f32[1,12], index: 8, kind: input, shape index: {}]
  %s9 = inlined_call_operand.vmem [shape: bf16[128,32], index: 9, kind: input, shape index: {}]
  %s10 = inlined_call_operand.vmem [shape: bf16[12,4], index: 10, kind: input, shape index: {}]
  %s11 = inlined_call_operand.vmem [shape: f32[8,4], index: 11, kind: output, shape index: {}]
  %s12 = sld [smem:[#allocation0]]
  $region54: #{tpu_custom_call.1} parent=0
    _
  %s14 = ssub.s32 1, %s12
  %s15 = scalar_select 0, %s14, %s12
  // Predicated region
  $region2: #{tpu_custom_call.1} parent=0 // pred_check
    _
  $region3: #{tpu_custom_call.1} parent=0 // pred_check_branch
    %17 = sbr.rel (0) target = $region5
  $region4: #{tpu_custom_call.1} parent=0 // pred_region
    _
  $region5: #{tpu_custom_call.1} parent=0 // pred_fallthru
    _
  // Predicated region
  $region6: #{tpu_custom_call.1} parent=0 // pred_check
    _
  $region7: #{tpu_custom_call.1} parent=0 // pred_check_branch
    %19 = sbr.rel (0) target = $region9
  $region8: #{tpu_custom_call.1} parent=0 // pred_region
    _
  $region9: #{tpu_custom_call.1} parent=0 // pred_fallthru
    _
  // Predicated region
  $region10: #{tpu_custom_call.1} parent=0 // pred_check
    _
  $region11: #{tpu_custom_call.1} parent=0 // pred_check_branch
    %21 = sbr.rel (0) target = $region13
  $region12: #{tpu_custom_call.1} parent=0 // pred_region
    _
  $region13: #{tpu_custom_call.1} parent=0 // pred_fallthru
    _
  // Predicated region
  $region14: #{tpu_custom_call.1} parent=0 // pred_check
    _
  $region15: #{tpu_custom_call.1} parent=0 // pred_check_branch
    %23 = sbr.rel (0) target = $region17
  $region16: #{tpu_custom_call.1} parent=0 // pred_region
    _
  $region17: #{tpu_custom_call.1} parent=0 // pred_fallthru
    _
  // Predicated region
  $region18: #{tpu_custom_call.1} parent=0 // pred_check
    _
  $region19: #{tpu_custom_call.1} parent=0 // pred_check_branch
    %25 = sbr.rel (0) target = $region21
  $region20: #{tpu_custom_call.1} parent=0 // pred_region
    _
  $region21: #{tpu_custom_call.1} parent=0 // pred_fallthru
    _
  // Predicated region
  $region22: #{tpu_custom_call.1} parent=0 // pred_check
    _
  $region23: #{tpu_custom_call.1} parent=0 // pred_check_branch
    %27 = sbr.rel (0) target = $region25
  $region24: #{tpu_custom_call.1} parent=0 // pred_region
    _
  $region25: #{tpu_custom_call.1} parent=0 // pred_fallthru
    _
  // Predicated region
  $region26: #{tpu_custom_call.1} parent=0 // pred_check
    _
  $region27: #{tpu_custom_call.1} parent=0 // pred_check_branch
    %29 = sbr.rel (0) target = $region29
  $region28: #{tpu_custom_call.1} parent=0 // pred_region
    _
  $region29: #{tpu_custom_call.1} parent=0 // pred_fallthru
    _
  // Predicated region
  $region30: #{tpu_custom_call.1} parent=0 // pred_check
    _
  $region31: #{tpu_custom_call.1} parent=0 // pred_check_branch
    %31 = sbr.rel (0) target = $region33
  $region32: #{tpu_custom_call.1} parent=0 // pred_region
    _
  $region33: #{tpu_custom_call.1} parent=0 // pred_fallthru
    _
  // Predicated region
  $region34: #{tpu_custom_call.1} parent=0 // pred_check
    _
  $region35: #{tpu_custom_call.1} parent=0 // pred_check_branch
    %33 = sbr.rel (0) target = $region37
  $region36: #{tpu_custom_call.1} parent=0 // pred_region
    _
  $region37: #{tpu_custom_call.1} parent=0 // pred_fallthru
    _
  // Predicated region
  $region38: #{tpu_custom_call.1} parent=0 // pred_check
    _
  $region39: #{tpu_custom_call.1} parent=0 // pred_check_branch
    %35 = sbr.rel (0) target = $region41
  $region40: #{tpu_custom_call.1} parent=0 // pred_region
    _
  $region41: #{tpu_custom_call.1} parent=0 // pred_fallthru
    _
  // Predicated region
  $region42: #{tpu_custom_call.1} parent=0 // pred_check
    _
  $region43: #{tpu_custom_call.1} parent=0 // pred_check_branch
    %37 = sbr.rel (0) target = $region45
  $region44: #{tpu_custom_call.1} parent=0 // pred_region
    _
  $region45: #{tpu_custom_call.1} parent=0 // pred_fallthru
    _
  %v39 = vld [vmem:[%s1] sm:$0xf]
  %v40 = vld [vmem:[%s0] sm:$0xff]
  %v41 = vlaneseq
  %v42 = vand.u32 %v41, 127
  %43 = vset.pattern.permute.xlu0 0
  %44 = vperm.xlu0 %43, %v40
  %v45 = vpop.permute.xlu0 %44
  %vm46 = vcmp.eq.s32.totalorder %v42, %v45
  %v47 = vsel %vm46, 1, 0
  %v48 = vcvt.s32.f32 %v47
  %v49 = vpack.c.bf16 %v48, %v48
  %v50 = vld [vmem:[%s6] sm:$0xf]
  %v53 = vunpack.c.l.s4 1983009808
  %v54 = vunpack.c.0.s8 %v53
  %v55 = vlaneseq
  %v56 = vshrl.u32 %v55, 7
  %v57 = vsub.s32 %v54, %v56
  %v58 = vrot.slane %v50, %v57
  %v59 = vcombine.high %v58, %v58
  %vm60 = vcmask 23552
  %v62 = vsel %vm60, %v49, 0
  %vm64 = vcmask 1040384
  %vm65 = vcmask 1041408
  %v66 = vsel %vm64, 4294967295, 65535
  %v67 = vsel %vm65, %v66, 0
  %v69 = vand.u32 %v58, %v67
  %v72 = vand.u32 %v59, %v67
  %74 = vmatprep.subr.bf16.mxu0 %v72
  %75 = vmatpush1.bf16.msra.mxu0 %v69
  %76 = vmatprep.subr.bf16.mxu0 0
  %77 = vmatpush1.bf16.msra.mxu0 0
  %78 = vmatprep.subr.bf16.mxu0 0
  %79 = vmatpush1.bf16.msra.mxu0 0
  %80 = vmatprep.subr.bf16.mxu0 0
  %81 = vmatpush1.bf16.msra.mxu0 0
  %82 = vmatprep.subr.bf16.mxu0 0
  %83 = vmatpush1.bf16.msra.mxu0 0
  %84 = vmatprep.subr.bf16.mxu0 0
  %85 = vmatpush1.bf16.msra.mxu0 0
  %86 = vmatprep.subr.bf16.mxu0 0
  %87 = vmatpush1.bf16.msra.mxu0 0
  %88 = vmatprep.subr.bf16.mxu0 0
  %89 = vmatpush1.bf16.msra.mxu0 0
  %90 = vmatprep.subr.bf16.mxu0 0
  %91 = vmatpush1.bf16.msra.mxu0 0
  %92 = vmatprep.subr.bf16.mxu0 0
  %93 = vmatpush1.bf16.msra.mxu0 0
  %94 = vmatprep.subr.bf16.mxu0 0
  %95 = vmatpush1.bf16.msra.mxu0 0
  %96 = vmatprep.subr.bf16.mxu0 0
  %97 = vmatpush1.bf16.msra.mxu0 0
  %98 = vmatprep.subr.bf16.mxu0 0
  %99 = vmatpush1.bf16.msra.mxu0 0
  %100 = vmatprep.subr.bf16.mxu0 0
  %101 = vmatpush1.bf16.msra.mxu0 0
  %102 = vmatprep.subr.bf16.mxu0 0
  %103 = vmatpush1.bf16.msra.mxu0 0
  %104 = vmatprep.subr.bf16.mxu0 0
  %105 = vmatpush1.bf16.msra.mxu0 0
  %106 = vmatprep.mubr.bf16.mxu0 0
  %107 = vmatmul.mubr.bf16.gmra.mrb[0].mxu0 %v62
  %v108 = vpop.f32.mrb[0].mxu0
  %v109 = vadd.f32 0.0, %v108
  %v110 = vpop.f32.mrb[0].mxu0
  %v111 = vadd.f32 0.0, %v110
  %v112 = vpop.f32.mrb[0].mxu0
  %v113 = vpop.f32.mrb[0].mxu0
  %114 = vdwg.mxu0
  %v115 = vld [vmem:[%s2] sm:$0xf]
  %v116 = vld [vmem:[%s2 + $0x4] sm:$0xf]
  %v117 = vld [vmem:[%s3] sm:$0x1]
  %v119 = vlaneseq
  %v120 = vshrl.u32 %v119, 7
  %v121 = vsub.s32 0, %v120
  %v122 = vrot.slane %v117, %v121
  %v126 = vunpack.c.l.b16 %v115
  %v127 = vunpack.c.l.b16 %v116
  %v128 = vpack.c.b16 %v127, %v126
  %vm130 = vcmask 130048
  %v132 = vsel %vm130, %v39, 0
  %134 = vmatprep.subr.bf16.mxu0 0
  %135 = vmatpush1.bf16.msra.mxu0 %v128
  %136 = vmatprep.subr.bf16.mxu0 0
  %137 = vmatpush1.bf16.msra.mxu0 0
  %138 = vmatprep.subr.bf16.mxu0 0
  %139 = vmatpush1.bf16.msra.mxu0 0
  %140 = vmatprep.subr.bf16.mxu0 0
  %141 = vmatpush1.bf16.msra.mxu0 0
  %142 = vmatprep.subr.bf16.mxu0 0
  %143 = vmatpush1.bf16.msra.mxu0 0
  %144 = vmatprep.subr.bf16.mxu0 0
  %145 = vmatpush1.bf16.msra.mxu0 0
  %146 = vmatprep.subr.bf16.mxu0 0
  %147 = vmatpush1.bf16.msra.mxu0 0
  %148 = vmatprep.subr.bf16.mxu0 0
  %149 = vmatpush1.bf16.msra.mxu0 0
  %150 = vmatprep.subr.bf16.mxu0 0
  %151 = vmatpush1.bf16.msra.mxu0 0
  %152 = vmatprep.subr.bf16.mxu0 0
  %153 = vmatpush1.bf16.msra.mxu0 0
  %154 = vmatprep.subr.bf16.mxu0 0
  %155 = vmatpush1.bf16.msra.mxu0 0
  %156 = vmatprep.subr.bf16.mxu0 0
  %157 = vmatpush1.bf16.msra.mxu0 0
  %158 = vmatprep.subr.bf16.mxu0 0
  %159 = vmatpush1.bf16.msra.mxu0 0
  %160 = vmatprep.subr.bf16.mxu0 0
  %161 = vmatpush1.bf16.msra.mxu0 0
  %162 = vmatprep.subr.bf16.mxu0 0
  %163 = vmatpush1.bf16.msra.mxu0 0
  %164 = vmatprep.subr.bf16.mxu0 0
  %165 = vmatpush1.bf16.msra.mxu0 0
  %166 = vmatprep.mubr.bf16.mxu0 0
  %167 = vmatmul.mubr.bf16.gmra.mrb[0].mxu0 %v132
  %v168 = vpop.f32.mrb[0].mxu0
  %v169 = vadd.f32 %v122, %v168
  %v170 = vpop.f32.mrb[0].mxu0
  %v171 = vpop.f32.mrb[0].mxu0
  %v172 = vpop.f32.mrb[0].mxu0
  %173 = vdwg.mxu0
  %v174 = vmax.f32 %v169, 0.0
  %v175 = vpack.c.bf16 %v174, %v174
  %v176 = vld [vmem:[%s4] sm:$0xf]
  %v177 = vld [vmem:[%s4 + $0x4] sm:$0xf]
  %v178 = vld [vmem:[%s4 + $0x8] sm:$0xf]
  %v179 = vld [vmem:[%s4 + $0xc] sm:$0xf]
  %v180 = vld [vmem:[%s4 + $0x10] sm:$0xf]
  %v181 = vld [vmem:[%s4 + $0x14] sm:$0xf]
  %v182 = vld [vmem:[%s4 + $0x18] sm:$0xf]
  %v183 = vld [vmem:[%s4 + $0x1c] sm:$0xf]
  %v184 = vld [vmem:[%s4 + $0x20] sm:$0xf]
  %v185 = vld [vmem:[%s4 + $0x24] sm:$0xf]
  %v186 = vld [vmem:[%s4 + $0x28] sm:$0xf]
  %v187 = vld [vmem:[%s4 + $0x2c] sm:$0xf]
  %v188 = vld [vmem:[%s4 + $0x30] sm:$0xf]
  %v189 = vld [vmem:[%s4 + $0x34] sm:$0xf]
  %v190 = vld [vmem:[%s4 + $0x38] sm:$0xf]
  %v191 = vld [vmem:[%s4 + $0x3c] sm:$0xf]
  %v192 = vld [vmem:[%s5] sm:$0x1]
  %v194 = vlaneseq
  %v195 = vshrl.u32 %v194, 7
  %v196 = vsub.s32 0, %v195
  %v197 = vrot.slane %v192, %v196
  %v215 = vunpack.c.l.b16 %v176
  %v216 = vunpack.c.l.b16 %v177
  %v217 = vunpack.c.l.b16 %v178
  %v218 = vunpack.c.l.b16 %v179
  %v219 = vunpack.c.l.b16 %v180
  %v220 = vunpack.c.l.b16 %v181
  %v221 = vunpack.c.l.b16 %v182
  %v222 = vunpack.c.l.b16 %v183
  %v223 = vunpack.c.l.b16 %v184
  %v224 = vunpack.c.l.b16 %v185
  %v225 = vunpack.c.l.b16 %v186
  %v226 = vunpack.c.l.b16 %v187
  %v227 = vunpack.c.l.b16 %v188
  %v228 = vunpack.c.l.b16 %v189
  %v229 = vunpack.c.l.b16 %v190
  %v230 = vunpack.c.l.b16 %v191
  %v231 = vpack.c.b16 %v216, %v215
  %v232 = vpack.c.b16 %v218, %v217
  %v233 = vpack.c.b16 %v220, %v219
  %v234 = vpack.c.b16 %v222, %v221
  %v235 = vpack.c.b16 %v224, %v223
  %v236 = vpack.c.b16 %v226, %v225
  %v237 = vpack.c.b16 %v228, %v227
  %v238 = vpack.c.b16 %v230, %v229
  %247 = vmatprep.subr.bf16.mxu0 0
  %248 = vmatpush1.bf16.msra.mxu0 %v231
  %249 = vmatprep.subr.bf16.mxu0 0
  %250 = vmatpush1.bf16.msra.mxu0 %v232
  %251 = vmatprep.subr.bf16.mxu0 0
  %252 = vmatpush1.bf16.msra.mxu0 %v233
  %253 = vmatprep.subr.bf16.mxu0 0
  %254 = vmatpush1.bf16.msra.mxu0 %v234
  %255 = vmatprep.subr.bf16.mxu0 0
  %256 = vmatpush1.bf16.msra.mxu0 %v235
  %257 = vmatprep.subr.bf16.mxu0 0
  %258 = vmatpush1.bf16.msra.mxu0 %v236
  %259 = vmatprep.subr.bf16.mxu0 0
  %260 = vmatpush1.bf16.msra.mxu0 %v237
  %261 = vmatprep.subr.bf16.mxu0 0
  %262 = vmatpush1.bf16.msra.mxu0 %v238
  %263 = vmatprep.subr.bf16.mxu0 0
  %264 = vmatpush1.bf16.msra.mxu0 0
  %265 = vmatprep.subr.bf16.mxu0 0
  %266 = vmatpush1.bf16.msra.mxu0 0
  %267 = vmatprep.subr.bf16.mxu0 0
  %268 = vmatpush1.bf16.msra.mxu0 0
  %269 = vmatprep.subr.bf16.mxu0 0
  %270 = vmatpush1.bf16.msra.mxu0 0
  %271 = vmatprep.subr.bf16.mxu0 0
  %272 = vmatpush1.bf16.msra.mxu0 0
  %273 = vmatprep.subr.bf16.mxu0 0
  %274 = vmatpush1.bf16.msra.mxu0 0
  %275 = vmatprep.subr.bf16.mxu0 0
  %276 = vmatpush1.bf16.msra.mxu0 0
  %277 = vmatprep.subr.bf16.mxu0 0
  %278 = vmatpush1.bf16.msra.mxu0 0
  %279 = vmatprep.mubr.bf16.mxu0 0
  %280 = vmatmul.mubr.bf16.gmra.mrb[0].mxu0 %v175
  %v281 = vpop.f32.mrb[0].mxu0
  %v282 = vadd.f32 %v197, %v281
  %v283 = vpop.f32.mrb[0].mxu0
  %v284 = vpop.f32.mrb[0].mxu0
  %v285 = vpop.f32.mrb[0].mxu0
  %286 = vdwg.mxu0
  %v287 = vmax.f32 %v282, 0.0
  %v288 = vmul.f32 %v109, %v287
  %v289 = vpack.c.bf16 %v288, %v288
  %v290 = vld [vmem:[%s9] sm:$0xf]
  %v291 = vld [vmem:[%s9 + $0x4] sm:$0xf]
  %v292 = vld [vmem:[%s9 + $0x8] sm:$0xf]
  %v293 = vld [vmem:[%s9 + $0xc] sm:$0xf]
  %v294 = vld [vmem:[%s9 + $0x10] sm:$0xf]
  %v295 = vld [vmem:[%s9 + $0x14] sm:$0xf]
  %v296 = vld [vmem:[%s9 + $0x18] sm:$0xf]
  %v297 = vld [vmem:[%s9 + $0x1c] sm:$0xf]
  %v298 = vld [vmem:[%s9 + $0x20] sm:$0xf]
  %v299 = vld [vmem:[%s9 + $0x24] sm:$0xf]
  %v300 = vld [vmem:[%s9 + $0x28] sm:$0xf]
  %v301 = vld [vmem:[%s9 + $0x2c] sm:$0xf]
  %v302 = vld [vmem:[%s9 + $0x30] sm:$0xf]
  %v303 = vld [vmem:[%s9 + $0x34] sm:$0xf]
  %v304 = vld [vmem:[%s9 + $0x38] sm:$0xf]
  %v305 = vld [vmem:[%s9 + $0x3c] sm:$0xf]
  %v322 = vunpack.c.l.b16 %v290
  %v323 = vunpack.c.l.b16 %v291
  %v324 = vunpack.c.l.b16 %v292
  %v325 = vunpack.c.l.b16 %v293
  %v326 = vunpack.c.l.b16 %v294
  %v327 = vunpack.c.l.b16 %v295
  %v328 = vunpack.c.l.b16 %v296
  %v329 = vunpack.c.l.b16 %v297
  %v330 = vunpack.c.l.b16 %v298
  %v331 = vunpack.c.l.b16 %v299
  %v332 = vunpack.c.l.b16 %v300
  %v333 = vunpack.c.l.b16 %v301
  %v334 = vunpack.c.l.b16 %v302
  %v335 = vunpack.c.l.b16 %v303
  %v336 = vunpack.c.l.b16 %v304
  %v337 = vunpack.c.l.b16 %v305
  %v338 = vpack.c.b16 %v323, %v322
  %v339 = vpack.c.b16 %v325, %v324
  %v340 = vpack.c.b16 %v327, %v326
  %v341 = vpack.c.b16 %v329, %v328
  %v342 = vpack.c.b16 %v331, %v330
  %v343 = vpack.c.b16 %v333, %v332
  %v344 = vpack.c.b16 %v335, %v334
  %v345 = vpack.c.b16 %v337, %v336
  %354 = vmatprep.subr.bf16.mxu0 0
  %355 = vmatpush1.bf16.msra.mxu0 %v338
  %356 = vmatprep.subr.bf16.mxu0 0
  %357 = vmatpush1.bf16.msra.mxu0 %v339
  %358 = vmatprep.subr.bf16.mxu0 0
  %359 = vmatpush1.bf16.msra.mxu0 %v340
  %360 = vmatprep.subr.bf16.mxu0 0
  %361 = vmatpush1.bf16.msra.mxu0 %v341
  %362 = vmatprep.subr.bf16.mxu0 0
  %363 = vmatpush1.bf16.msra.mxu0 %v342
  %364 = vmatprep.subr.bf16.mxu0 0
  %365 = vmatpush1.bf16.msra.mxu0 %v343
  %366 = vmatprep.subr.bf16.mxu0 0
  %367 = vmatpush1.bf16.msra.mxu0 %v344
  %368 = vmatprep.subr.bf16.mxu0 0
  %369 = vmatpush1.bf16.msra.mxu0 %v345
  %370 = vmatprep.subr.bf16.mxu0 0
  %371 = vmatpush1.bf16.msra.mxu0 0
  %372 = vmatprep.subr.bf16.mxu0 0
  %373 = vmatpush1.bf16.msra.mxu0 0
  %374 = vmatprep.subr.bf16.mxu0 0
  %375 = vmatpush1.bf16.msra.mxu0 0
  %376 = vmatprep.subr.bf16.mxu0 0
  %377 = vmatpush1.bf16.msra.mxu0 0
  %378 = vmatprep.subr.bf16.mxu0 0
  %379 = vmatpush1.bf16.msra.mxu0 0
  %380 = vmatprep.subr.bf16.mxu0 0
  %381 = vmatpush1.bf16.msra.mxu0 0
  %382 = vmatprep.subr.bf16.mxu0 0
  %383 = vmatpush1.bf16.msra.mxu0 0
  %384 = vmatprep.subr.bf16.mxu0 0
  %385 = vmatpush1.bf16.msra.mxu0 0
  %386 = vmatprep.mubr.bf16.mxu0 0
  %387 = vmatmul.mubr.bf16.gmra.mrb[0].mxu0 %v289
  %v388 = vpop.f32.mrb[0].mxu0
  %v389 = vadd.f32 0.0, %v388
  %v390 = vpop.f32.mrb[0].mxu0
  %v391 = vpop.f32.mrb[0].mxu0
  %v392 = vpop.f32.mrb[0].mxu0
  %393 = vdwg.mxu0
  %v394 = vmax.f32 %v389, 0.0
  %v395 = vpack.c.bf16 %v394, %v394
  %v396 = vld [vmem:[%s7] sm:$0xf]
  %v397 = vld [vmem:[%s7 + $0x4] sm:$0xf]
  %v398 = vld [vmem:[%s7 + $0x8] sm:$0xf]
  %v399 = vld [vmem:[%s7 + $0xc] sm:$0xf]
  %v400 = vld [vmem:[%s8] sm:$0x1]
  %v402 = vlaneseq
  %v403 = vshrl.u32 %v402, 7
  %v404 = vsub.s32 0, %v403
  %v405 = vrot.slane %v400, %v404
  %v411 = vunpack.c.l.b16 %v396
  %v412 = vunpack.c.l.b16 %v397
  %v413 = vunpack.c.l.b16 %v398
  %v414 = vunpack.c.l.b16 %v399
  %v415 = vpack.c.b16 %v412, %v411
  %v416 = vpack.c.b16 %v414, %v413
  %vm419 = vcmask 261120
  %v421 = vsel %vm419, %v395, 0
  %423 = vmatprep.subr.bf16.mxu0 0
  %424 = vmatpush1.bf16.msra.mxu0 %v415
  %425 = vmatprep.subr.bf16.mxu0 0
  %426 = vmatpush1.bf16.msra.mxu0 %v416
  %427 = vmatprep.subr.bf16.mxu0 0
  %428 = vmatpush1.bf16.msra.mxu0 0
  %429 = vmatprep.subr.bf16.mxu0 0
  %430 = vmatpush1.bf16.msra.mxu0 0
  %431 = vmatprep.subr.bf16.mxu0 0
  %432 = vmatpush1.bf16.msra.mxu0 0
  %433 = vmatprep.subr.bf16.mxu0 0
  %434 = vmatpush1.bf16.msra.mxu0 0
  %435 = vmatprep.subr.bf16.mxu0 0
  %436 = vmatpush1.bf16.msra.mxu0 0
  %437 = vmatprep.subr.bf16.mxu0 0
  %438 = vmatpush1.bf16.msra.mxu0 0
  %439 = vmatprep.subr.bf16.mxu0 0
  %440 = vmatpush1.bf16.msra.mxu0 0
  %441 = vmatprep.subr.bf16.mxu0 0
  %442 = vmatpush1.bf16.msra.mxu0 0
  %443 = vmatprep.subr.bf16.mxu0 0
  %444 = vmatpush1.bf16.msra.mxu0 0
  %445 = vmatprep.subr.bf16.mxu0 0
  %446 = vmatpush1.bf16.msra.mxu0 0
  %447 = vmatprep.subr.bf16.mxu0 0
  %448 = vmatpush1.bf16.msra.mxu0 0
  %449 = vmatprep.subr.bf16.mxu0 0
  %450 = vmatpush1.bf16.msra.mxu0 0
  %451 = vmatprep.subr.bf16.mxu0 0
  %452 = vmatpush1.bf16.msra.mxu0 0
  %453 = vmatprep.subr.bf16.mxu0 0
  %454 = vmatpush1.bf16.msra.mxu0 0
  %455 = vmatprep.mubr.bf16.mxu0 0
  %456 = vmatmul.mubr.bf16.gmra.mrb[0].mxu0 %v421
  %v457 = vpop.f32.mrb[0].mxu0
  %v458 = vadd.f32 %v405, %v457
  %v459 = vpop.f32.mrb[0].mxu0
  %v460 = vpop.f32.mrb[0].mxu0
  %v461 = vpop.f32.mrb[0].mxu0
  %462 = vdwg.mxu0
  %v463 = vmul.f32 %v458, %v111
  %v464 = vpack.c.bf16 %v463, %v463
  %v465 = vld [vmem:[%s10] sm:$0xf]
  %v466 = vld [vmem:[%s10 + $0x4] sm:$0x3]
  %v469 = vunpack.c.l.b16 %v465
  %v470 = vunpack.c.l.b16 %v466
  %v471 = vpack.c.b16 %v470, %v469
  %vm472 = vcmask 97280
  %v474 = vsel %vm472, %v464, 0
  %vm476 = vcmask 1045504
  %v478 = vsel %vm476, %v471, 0
  %480 = vmatprep.subr.bf16.mxu0 0
  %481 = vmatpush1.bf16.msra.mxu0 %v478
  %482 = vmatprep.subr.bf16.mxu0 0
  %483 = vmatpush1.bf16.msra.mxu0 0
  %484 = vmatprep.subr.bf16.mxu0 0
  %485 = vmatpush1.bf16.msra.mxu0 0
  %486 = vmatprep.subr.bf16.mxu0 0
  %487 = vmatpush1.bf16.msra.mxu0 0
  %488 = vmatprep.subr.bf16.mxu0 0
  %489 = vmatpush1.bf16.msra.mxu0 0
  %490 = vmatprep.subr.bf16.mxu0 0
  %491 = vmatpush1.bf16.msra.mxu0 0
  %492 = vmatprep.subr.bf16.mxu0 0
  %493 = vmatpush1.bf16.msra.mxu0 0
  %494 = vmatprep.subr.bf16.mxu0 0
  %495 = vmatpush1.bf16.msra.mxu0 0
  %496 = vmatprep.subr.bf16.mxu0 0
  %497 = vmatpush1.bf16.msra.mxu0 0
  %498 = vmatprep.subr.bf16.mxu0 0
  %499 = vmatpush1.bf16.msra.mxu0 0
  %500 = vmatprep.subr.bf16.mxu0 0
  %501 = vmatpush1.bf16.msra.mxu0 0
  %502 = vmatprep.subr.bf16.mxu0 0
  %503 = vmatpush1.bf16.msra.mxu0 0
  %504 = vmatprep.subr.bf16.mxu0 0
  %505 = vmatpush1.bf16.msra.mxu0 0
  %506 = vmatprep.subr.bf16.mxu0 0
  %507 = vmatpush1.bf16.msra.mxu0 0
  %508 = vmatprep.subr.bf16.mxu0 0
  %509 = vmatpush1.bf16.msra.mxu0 0
  %510 = vmatprep.subr.bf16.mxu0 0
  %511 = vmatpush1.bf16.msra.mxu0 0
  %512 = vmatprep.mubr.bf16.mxu0 0
  %513 = vmatmul.mubr.bf16.gmra.mrb[0].mxu0 %v474
  %v514 = vpop.f32.mrb[0].mxu0
  %v515 = vadd.f32 0.0, %v514
  %v516 = vpop.f32.mrb[0].mxu0
  %v517 = vpop.f32.mrb[0].mxu0
  %v518 = vpop.f32.mrb[0].mxu0
  %519 = vdwg.mxu0
  %vm520 = vcmask 31744
  %521 = vst.msk [vmem:[%s11] sm:$0xff] %vm520, %v515
  // Predicated region
  $region46: #{tpu_custom_call.1} parent=0 // pred_check
    _
  $region47: #{tpu_custom_call.1} parent=0 // pred_check_branch
    %523 = sbr.rel (0) target = $region49
  $region48: #{tpu_custom_call.1} parent=0 // pred_region
    _
  $region49: #{tpu_custom_call.1} parent=0 // pred_fallthru
    _
  // Predicated region
  $region50: #{tpu_custom_call.1} parent=0 // pred_check
    _
  $region51: #{tpu_custom_call.1} parent=0 // pred_check_branch
    %525 = sbr.rel (0) target = $region53
  $region52: #{tpu_custom_call.1} parent=0 // pred_region
    _
  $region53: #{tpu_custom_call.1} parent=0 // pred_fallthru
    _

</llo_original>
